<compile_context>
chip_gen: v7x
topology: tpu7x:2x2x1
jax: 0.10.0
libtpu: 0.0.40
codegen_flags: <defaults>
</compile_context>

<pallas_src>
import jax
import jax.numpy as jnp
from jax.experimental import pallas as pl
from jax.experimental.pallas import tpu as pltpu


def _drop_path_kernel(scale_ref, x_ref, o_ref):
    # scale_ref : (Bt, 1) float32, values in {0, 1/keep_prob}
    # x_ref     : (Bt, L) x.dtype
    # o_ref     : (Bt, L) x.dtype
    o_ref[...] = (x_ref[...] * scale_ref[...]).astype(o_ref.dtype)


def _block_cap_bytes():
    """Per-generation block-size cap (bytes) for this memory-bound op."""
    cap = 4 << 20  # sensible default (v6e sweet spot)
    try:
        kind = jax.devices()[0].device_kind.lower()
    except Exception:
        return cap
    if "v5 lite" in kind or "v5e" in kind or "v5litepod" in kind:
        cap = 2 << 20   # 0.82 TB/s HBM: 2 MiB already hides per-step overhead
    elif "v6" in kind:
        cap = 4 << 20   # measured mem-bound knee ~4 MiB on v6e
    elif "v7" in kind:
        cap = 6 << 20   # 3.2 TB/s HBM: bigger blocks, still << 64 MiB VMEM
    return cap


def _choose_block(B, N, itemsize, cap_bytes):
    """Pick a (Bt, L) block for the flattened (B, N) view.

    Lane (last dim) is maximized first (full rows preferred) so each block DMA
    is contiguous; Bt grows second.  Blocks never exceed `cap_bytes`.
    Non-divisible shapes are handled by the caller with a cdiv grid (Pallas
    masks the edge blocks), so no oversized fallback block can be produced.
    """
    # Sublane granularity: sub-32-bit dtypes pack along sublanes.
    sub = max(8, 32 // max(itemsize, 1))     # 8 f32, 16 bf16, 32 int8/fp8
    min_bt = B if B < sub else sub

    # 1) Lane: full row if it fits with the minimum batch tile, otherwise the
    #    largest multiple of 128 that does.
    if min_bt * N * itemsize <= cap_bytes:
        lane = N
    else:
        lane = (cap_bytes // (min_bt * itemsize)) // 128 * 128
        lane = max(128, min(lane, max(128, (N // 128) * 128)))

    # 2) Batch tile: full batch if it fits, else the largest multiple of sub.
    if B * lane * itemsize <= cap_bytes:
        bt = B
    else:
        bt = (cap_bytes // (lane * itemsize)) // sub * sub
        bt = max(sub, min(bt, max(sub, (B // sub) * sub)))
    return bt, lane, sub


def drop_path(x, drop_prob, key, training=True, *, block_cap_bytes=None):
    """JAX/Pallas equivalent of DropPath.forward.

    drop_prob is expected to be a static Python float (as in the nn.Module).
    """
    if drop_prob is None or drop_prob == 0.0 or not training:
        return x
    if drop_prob >= 1.0:
        # keep_prob == 0 would divide by zero; everything is dropped.
        return jnp.zeros_like(x)

    keep_prob = 1.0 - float(drop_prob)
    B = int(x.shape[0])
    N = 1
    for d in x.shape[1:]:
        N *= int(d)

    # Per-sample scale, computed in float32: 0.0 or 1/keep_prob
    # (floor(keep_prob + U[0,1)) matches the PyTorch mask semantics).
    u = jax.random.uniform(key, (B, 1), dtype=jnp.float32)
    scale = jnp.floor(keep_prob + u) * jnp.float32(1.0 / keep_prob)

    # Lane-dense flat view (pure reshape of contiguous NCHW, no data movement).
    x2 = x.reshape(B, N)
    itemsize = x2.dtype.itemsize
    cap = int(block_cap_bytes) if block_cap_bytes is not None else _block_cap_bytes()
    bt, lane, sub = _choose_block(B, N, itemsize, cap)
    grid_b = pl.cdiv(B, bt)
    grid_n = pl.cdiv(N, lane)

    # Give multi-TensorCore chips (v7x) at least two parallel grid steps on
    # medium-sized inputs; costs at most one extra ~0.35 us step elsewhere.
    if grid_b * grid_n == 1 and B * N * itemsize > (1 << 20):
        if bt % (2 * sub) == 0:
            bt //= 2
        elif lane % 256 == 0:
            lane //= 2
        elif lane > 256:
            lane = pl.cdiv(pl.cdiv(lane, 2), 128) * 128
        grid_b = pl.cdiv(B, bt)
        grid_n = pl.cdiv(N, lane)

    block_bytes = bt * lane * itemsize
    # x in + out blocks, double-buffered, plus slack; clamp to <= 48 MiB so we
    # always leave compiler scratch headroom under v7x's 64 MiB physical VMEM.
    vmem_limit = int(min(max(4 * block_bytes + (2 << 20), 16 << 20), 48 << 20))

    out2 = pl.pallas_call(
        _drop_path_kernel,
        out_shape=jax.ShapeDtypeStruct((B, N), x.dtype),
        grid_spec=pltpu.PrefetchScalarGridSpec(
            num_scalar_prefetch=0,
            grid=(grid_b, grid_n),
            in_specs=[
                pl.BlockSpec((bt, 1), lambda i, j: (i, 0)),      # per-sample scale
                pl.BlockSpec((bt, lane), lambda i, j: (i, j)),   # x tile
            ],
            out_specs=pl.BlockSpec((bt, lane), lambda i, j: (i, j)),
        ),
        compiler_params=pltpu.CompilerParams(
            dimension_semantics=("parallel", "parallel"),
            vmem_limit_bytes=vmem_limit,
        ),
    )(scale, x2)

    return out2.reshape(x.shape)


if __name__ == "__main__":
    key = jax.random.PRNGKey(0)
    k_x, k_drop, k_x2, k_drop2, k_x3, k_drop3 = jax.random.split(key, 6)

    drop_prob = 0.3
    keep_prob = 1.0 - drop_prob

    # --- Test 1: small NCHW shape consistent with the ConvNeXt module -------
    B, C, H, W = 2, 4, 16, 16
    x = jax.random.normal(k_x, (B, C, H, W), dtype=jnp.float32)

    out = jax.block_until_ready(drop_path(x, drop_prob, k_drop, training=True))
    assert out.shape == x.shape and out.dtype == x.dtype

    u = jax.random.uniform(k_drop, (B, 1), dtype=jnp.float32)
    scale = jnp.floor(keep_prob + u) * (1.0 / keep_prob)
    ref = x * scale.reshape(B, 1, 1, 1)
    assert jnp.allclose(out, ref, atol=1e-6, rtol=1e-6)

    # Eval mode / drop_prob == 0.0 are the identity.
    assert jnp.array_equal(drop_path(x, drop_prob, k_drop, training=False), x)
    assert jnp.array_equal(drop_path(x, 0.0, k_drop, training=True), x)

    # --- Test 2: bf16 path (dtype-aware sublane tiling) ----------------------
    B2, C2, H2, W2 = 16, 8, 8, 8
    x2 = jax.random.normal(k_x2, (B2, C2, H2, W2), dtype=jnp.float32).astype(jnp.bfloat16)
    out2 = jax.block_until_ready(drop_path(x2, drop_prob, k_drop2, training=True))
    u2 = jax.random.uniform(k_drop2, (B2, 1), dtype=jnp.float32)
    scale2 = jnp.floor(keep_prob + u2) * (1.0 / keep_prob)
    ref2 = (x2.astype(jnp.float32).reshape(B2, -1) * scale2).astype(jnp.bfloat16)
    assert out2.dtype == jnp.bfloat16
    assert jnp.allclose(out2.reshape(B2, -1).astype(jnp.float32),
                        ref2.astype(jnp.float32), atol=1e-2, rtol=1e-2)

    # --- Test 3: force a multi-step grid (small cap) with a masked lane edge -
    B3, C3, H3, W3 = 8, 32, 14, 14            # N = 6272 = 49 * 128
    x3 = jax.random.normal(k_x3, (B3, C3, H3, W3), dtype=jnp.float32)
    out3 = jax.block_until_ready(
        drop_path(x3, drop_prob, k_drop3, training=True, block_cap_bytes=64 * 1024))
    u3 = jax.random.uniform(k_drop3, (B3, 1), dtype=jnp.float32)
    scale3 = jnp.floor(keep_prob + u3) * (1.0 / keep_prob)
    ref3 = x3.reshape(B3, -1) * scale3
    assert jnp.allclose(out3.reshape(B3, -1), ref3, atol=1e-6, rtol=1e-6)

    print("KERNEL_OK")
</pallas_src>

<mosaic_0001>
module attributes {stable_mosaic.version = 11 : i64} {
  func.func @_drop_path_kernel(%arg0: i32, %arg1: i32, %arg2: memref<2x1xf32, #tpu.memory_space<vmem>>, %arg3: memref<2x1024xf32, #tpu.memory_space<vmem>>, %arg4: memref<2x1024xf32, #tpu.memory_space<vmem>>) attributes {dimension_semantics = [#tpu.dimension_semantics<parallel>, #tpu.dimension_semantics<parallel>], iteration_bounds = array<i64: 1, 1>, scalar_prefetch = 0 : i64, scratch_operands = 0 : i64, tpu.core_type = #tpu.core_type<tc>, window_params = [{transform_indices = @transform_0, window_bounds = array<i64: 2, 1>}, {transform_indices = @transform_1, window_bounds = array<i64: 2, 1024>}, {transform_indices = @transform_2, window_bounds = array<i64: 2, 1024>}]} {
    %c0 = arith.constant 0 : index
    %c0_0 = arith.constant 0 : index
    %0 = vector.load %arg3[%c0, %c0_0] : memref<2x1024xf32, #tpu.memory_space<vmem>>, vector<2x1024xf32>
    %c0_1 = arith.constant 0 : index
    %c0_2 = arith.constant 0 : index
    %1 = vector.load %arg2[%c0_1, %c0_2] : memref<2x1xf32, #tpu.memory_space<vmem>>, vector<2x1xf32>
    %2 = vector.broadcast %1 : vector<2x1xf32> to vector<2x1024xf32>
    %3 = arith.mulf %0, %2 : vector<2x1024xf32>
    %c0_3 = arith.constant 0 : index
    %c0_4 = arith.constant 0 : index
    %4 = vector.load %arg4[%c0_3, %c0_4] : memref<2x1024xf32, #tpu.memory_space<vmem>>, vector<2x1024xf32>
    tpu.vector_store %arg4[%c0_3, %c0_4], %3 {strides = array<i32>} : memref<2x1024xf32, #tpu.memory_space<vmem>>, vector<2x1024xf32>,
    return
  }
  func.func @transform_0(%arg0: i32, %arg1: i32) -> (i32, i32) {
    %c0_i32 = arith.constant 0 : i32
    %c0_i32_0 = arith.constant 0 : i32
    return %arg0, %c0_i32 : i32, i32
  }
  func.func @transform_1(%arg0: i32, %arg1: i32) -> (i32, i32) {
    %c0_i32 = arith.constant 0 : i32
    return %arg0, %arg1 : i32, i32
  }
  func.func @transform_2(%arg0: i32, %arg1: i32) -> (i32, i32) {
    %c0_i32 = arith.constant 0 : i32
    return %arg0, %arg1 : i32, i32
  }
}

</mosaic_0001>

<llo_original>
// kernel: tpu_custom_call.1
$region0: #{tpu_custom_call.1}
  #allocation0 [shape = 'u32[]', space=smem, size = 0x4, offset = 0x4, fixed_abs, tag = 'smem constant byte address 0x4 - core index']
  #allocation1 [shape = 'u32[144,128]{1,0:T(1,128)}', space=vmem, size = 0x12000, scoped, tag = 'internal scratch']
  %s0 = inlined_call_operand.vmem [shape: f32[2,1], index: 0, kind: input, shape index: {}]
  %s1 = inlined_call_operand.hbm [shape: f32[2,1024], index: 1, kind: input, shape index: {}]
  %s2 = inlined_call_operand.hbm [shape: f32[2,1024], index: 2, kind: output, shape index: {}]
  %s3 = sld [smem:[#allocation0]]
  $region22: #{tpu_custom_call.1} parent=0
    _
  %s5 = ssub.s32 1, %s3
  %s6 = scalar_select 0, %s5, %s3
  $region1: #{tpu_custom_call.1} parent=0
    #allocation2 [shape = 'u8[8192]{0}', space=vmem, size = 0x2000, scoped, tag = 'input window, operand 1, single buffered']
    #allocation3 [shape = 's32[1]{0}', space=sflag, size = 0x4, scoped, tag = 'scoped memory for tpu_custom_call.1']
    #allocation4 [shape = 's32[1]{0}', space=sflag, size = 0x4, scoped, tag = 'scoped memory for tpu_custom_call.1']
    #allocation5 [shape = 'u8[8192]{0}', space=vmem, size = 0x2000, scoped, tag = 'output window, operand 0, single buffered']
    %7 = vsyncpa [#allocation3], 0
    %8 = vsyncpa [#allocation4], 0
    // Predicated region
    $region2: #{tpu_custom_call.1} parent=1 // pred_check
      _
    $region3: #{tpu_custom_call.1} parent=1 // pred_check_branch
      %10 = sbr.rel (0) target = $region5
    $region4: #{tpu_custom_call.1} parent=1 // pred_region
      _
    $region5: #{tpu_custom_call.1} parent=1 // pred_fallthru
      _
    // Predicated region
    $region6: #{tpu_custom_call.1} parent=1 // pred_check
      _
    $region7: #{tpu_custom_call.1} parent=1 // pred_check_branch
      %12 = sbr.rel (0) target = $region9
    $region8: #{tpu_custom_call.1} parent=1 // pred_region
      %s14 = ssub.s32 256, 256
      %15 = vsyncadd [#allocation3], %s14
      %s17 = sshll.u32 [#allocation2], 4
      %s18 = int_to_ptr.vmem [resolvable:$true] %s17
      %20 = dma.hbm_to_vmem [thread:$0]  %s1, 256, %s18, [#allocation3]
    $region9: #{tpu_custom_call.1} parent=1 // pred_fallthru
      _
    // Predicated region
    $region10: #{tpu_custom_call.1} parent=1 // pred_check
      _
    $region11: #{tpu_custom_call.1} parent=1 // pred_check_branch
      %22 = sbr.rel (0) target = $region13
    $region12: #{tpu_custom_call.1} parent=1 // pred_region
      %23 = dma.done [#allocation3], 256
    $region13: #{tpu_custom_call.1} parent=1 // pred_fallthru
      _
    %v24 = vld [vmem:[#allocation2] sm:$0xff]
    %v25 = vld [vmem:[#allocation2 + $0x8] sm:$0xff]
    %v26 = vld [vmem:[%s0] sm:$0x3]
    %28 = vset.pattern.permute.xlu0 0
    %29 = vperm.xlu0 %28, %v26
    %v30 = vpop.permute.xlu0 %29
    %v32 = vunpack.c.l.s4 269488144
    %v33 = vunpack.c.0.s8 %v32
    %v34 = vlaneseq
    %v35 = vshrl.u32 %v34, 7
    %v36 = vsub.s32 %v33, %v35
    %v37 = vrot.slane %v30, %v36
    %v39 = vmul.f32 %v24, %v37
    %v40 = vmul.f32 %v25, %v37
    %41 = vst [vmem:[#allocation5] sm:$0xff] %v39
    %42 = vst [vmem:[#allocation5 + $0x8] sm:$0xff] %v40
    // Predicated region
    $region14: #{tpu_custom_call.1} parent=1 // pred_check
      _
    $region15: #{tpu_custom_call.1} parent=1 // pred_check_branch
      %44 = sbr.rel (0) target = $region17
    $region16: #{tpu_custom_call.1} parent=1 // pred_region
      %s46 = ssub.s32 256, 256
      %47 = vsyncadd [#allocation4], %s46
      %s49 = sshll.u32 [#allocation5], 4
      %s50 = int_to_ptr.vmem [resolvable:$true] %s49
      %52 = dma.vmem_to_hbm [thread:$0]  %s50, 256, %s2, [#allocation4]
    $region17: #{tpu_custom_call.1} parent=1 // pred_fallthru
      _
    // Predicated region
    $region18: #{tpu_custom_call.1} parent=1 // pred_check
      _
    $region19: #{tpu_custom_call.1} parent=1 // pred_check_branch
      %54 = sbr.rel (0) target = $region21
    $region20: #{tpu_custom_call.1} parent=1 // pred_region
      %55 = dma.done [#allocation4], 256
    $region21: #{tpu_custom_call.1} parent=1 // pred_fallthru
      _
    %56 = vsyncpa [#allocation3], 1
    %57 = vsyncpa [#allocation4], 1

</llo_original>
